<compile_context>
chip_gen: v7x
topology: tpu7x:2x2x1
jax: 0.10.0
libtpu: 0.0.40
codegen_flags: <defaults>
</compile_context>

<pallas_src>
import functools

import jax
import jax.numpy as jnp
from jax import lax
from jax.experimental import pallas as pl
from jax.experimental.pallas import tpu as pltpu


def _dsconv_kernel(xpf_ref, wd_ref, b1_ref, w2_ref, b2_ref, o_ref, *, H, W):
    """Fused depthwise(3x3,s=1)+BN+hswish -> pointwise(1x1)+BN+hswish.

    xpf_ref: (1, C1, (H+2)*W + 2) zero-padded, flattened input for one image
    wd_ref : (9, C1, 1)           depthwise taps with BN1 scale folded in
    b1_ref : (C1, 1)              folded BN1 bias
    w2_ref : (C2, C1)             pointwise weight with BN2 scale folded in
    b2_ref : (C2, 1)              folded BN2 bias
    o_ref  : (1, C2, H*W)         lane-dense output slab
    """
    HW = H * W
    xp = xpf_ref[0]                                   # (C1, (H+2)*W + 2)

    # Column-boundary masks: the kx=0 (left) / kx=2 (right) taps must not wrap
    # across image rows.  Computed once per grid step on the VPU.
    col = lax.broadcasted_iota(jnp.int32, (1, HW), 1) % W
    m_left = (col != 0).astype(jnp.float32)
    m_right = (col != W - 1).astype(jnp.float32)

    def tap(ky, kx):
        # output flat index f = h*W + w reads padded flat index
        #   1 + ky*W + (kx-1) + f
        start = 1 + ky * W + (kx - 1)
        return wd_ref[ky * 3 + kx] * xp[:, start:start + HW]

    center = tap(0, 1) + tap(1, 1) + tap(2, 1)
    left = tap(0, 0) + tap(1, 0) + tap(2, 0)
    right = tap(0, 2) + tap(1, 2) + tap(2, 2)
    dw = center + m_left * left + m_right * right     # (C1, HW) depthwise conv

    dw = dw + b1_ref[...]                             # folded BN1
    dw = dw * jnp.clip(dw + 3.0, 0.0, 6.0) * (1.0 / 6.0)   # Hardswish

    y = jnp.dot(w2_ref[...], dw,                      # pointwise conv on MXU
                preferred_element_type=jnp.float32,
                precision=lax.Precision.HIGHEST)      # (C2, HW)
    y = y + b2_ref[...]                               # folded BN2
    o_ref[0] = y * jnp.clip(y + 3.0, 0.0, 6.0) * (1.0 / 6.0)   # Hardswish


def depth_separable_conv2d(x, dw_weight, pw_weight,
                           bn1_gamma, bn1_beta, bn1_mean, bn1_var,
                           bn2_gamma, bn2_beta, bn2_mean, bn2_var,
                           eps=1e-5):
    """DepthSeperabelConv2d.forward for the module defaults.

    x:         (N, C1, H, W) float32
    dw_weight: (C1, 1, 3, 3) torch depthwise Conv2d weight
    pw_weight: (C2, C1, 1, 1) torch pointwise Conv2d weight
    BatchNorms are applied in eval mode with the provided running stats.
    """
    n, c1, h, w = x.shape
    c2 = pw_weight.shape[0]
    assert dw_weight.shape == (c1, 1, 3, 3)
    hw = h * w
    lp = (h + 2) * w + 2

    # ---- Fold BatchNorms (eval mode) into the conv weights at trace time ----
    s1 = bn1_gamma / jnp.sqrt(bn1_var + eps)                        # (C1,)
    wd_eff = dw_weight[:, 0].astype(jnp.float32) * s1[:, None, None]  # (C1,3,3)
    wd9 = jnp.transpose(wd_eff.reshape(c1, 9), (1, 0))[:, :, None]  # (9,C1,1)
    b1 = (bn1_beta - bn1_mean * s1)[:, None].astype(jnp.float32)    # (C1,1)

    s2 = bn2_gamma / jnp.sqrt(bn2_var + eps)                        # (C2,)
    w2 = pw_weight.reshape(c2, c1).astype(jnp.float32) * s2[:, None]  # (C2,C1)
    b2 = (bn2_beta - bn2_mean * s2)[:, None].astype(jnp.float32)    # (C2,1)

    # ---- Zero-pad H (SAME conv) and flatten spatial; pad the flat axis by one
    # element on each side so every 3x3 tap is an in-bounds lane-shifted slice
    # (row wrap of left/right taps is masked inside the kernel). ----
    xp = jnp.pad(x.astype(jnp.float32), ((0, 0), (0, 0), (1, 1), (0, 0)))
    xpf = jnp.pad(xp.reshape(n, c1, (h + 2) * w), ((0, 0), (0, 0), (1, 1)))

    kernel = functools.partial(_dsconv_kernel, H=h, W=w)
    flops = 2 * n * hw * (9 * c1 + c1 * c2)
    bytes_accessed = 4 * (n * c1 * lp + n * c2 * hw
                          + c1 * 10 + c2 * (c1 + 1))

    out_flat = pl.pallas_call(
        kernel,
        out_shape=jax.ShapeDtypeStruct((n, c2, hw), jnp.float32),
        grid_spec=pltpu.PrefetchScalarGridSpec(
            num_scalar_prefetch=0,
            grid=(n,),
            in_specs=[
                pl.BlockSpec((1, c1, lp), lambda i: (i, 0, 0)),   # activations
                pl.BlockSpec((9, c1, 1), lambda i: (0, 0, 0)),    # dw taps
                pl.BlockSpec((c1, 1), lambda i: (0, 0)),          # bias1
                pl.BlockSpec((c2, c1), lambda i: (0, 0)),         # pw weight
                pl.BlockSpec((c2, 1), lambda i: (0, 0)),          # bias2
            ],
            out_specs=pl.BlockSpec((1, c2, hw), lambda i: (i, 0, 0)),
        ),
        compiler_params=pltpu.CompilerParams(
            dimension_semantics=("parallel",)),
        cost_estimate=pl.CostEstimate(flops=flops, transcendentals=0,
                                      bytes_accessed=bytes_accessed),
    )(xpf, wd9, b1, w2, b2)

    # Free contiguous reshape back to NCHW (no transpose, no extra HBM pass).
    return out_flat.reshape(n, c2, h, w)


def _reference(x, dw_weight, pw_weight,
               g1, be1, m1, v1, g2, be2, m2, v2, eps=1e-5):
    c1 = x.shape[1]
    dw = lax.conv_general_dilated(
        x, dw_weight, window_strides=(1, 1), padding=((1, 1), (1, 1)),
        dimension_numbers=("NCHW", "OIHW", "NCHW"),
        feature_group_count=c1, precision=lax.Precision.HIGHEST)
    y = ((dw - m1[None, :, None, None])
         * (g1 / jnp.sqrt(v1 + eps))[None, :, None, None]
         + be1[None, :, None, None])
    y = y * jnp.clip(y + 3.0, 0.0, 6.0) / 6.0
    pw = jnp.einsum("nchw,oc->nohw", y, pw_weight[:, :, 0, 0],
                    precision=lax.Precision.HIGHEST)
    z = ((pw - m2[None, :, None, None])
         * (g2 / jnp.sqrt(v2 + eps))[None, :, None, None]
         + be2[None, :, None, None])
    return z * jnp.clip(z + 3.0, 0.0, 6.0) / 6.0


if __name__ == "__main__":
    key = jax.random.PRNGKey(0)
    keys = jax.random.split(key, 11)

    # Small shapes: DepthSeperabelConv2d(inplanes=4, planes=32), batch=2, 16x16.
    N, C1, H, W = 2, 4, 16, 16
    C2 = 32

    x = jax.random.normal(keys[0], (N, C1, H, W), dtype=jnp.float32)
    dw_w = jax.random.normal(keys[1], (C1, 1, 3, 3), dtype=jnp.float32) * 0.2
    pw_w = jax.random.normal(keys[2], (C2, C1, 1, 1), dtype=jnp.float32) * 0.2

    bn1_gamma = 1.0 + 0.1 * jax.random.normal(keys[3], (C1,), dtype=jnp.float32)
    bn1_beta = 0.1 * jax.random.normal(keys[4], (C1,), dtype=jnp.float32)
    bn1_mean = 0.1 * jax.random.normal(keys[5], (C1,), dtype=jnp.float32)
    bn1_var = jnp.abs(1.0 + 0.1 * jax.random.normal(keys[6], (C1,),
                                                    dtype=jnp.float32))

    bn2_gamma = 1.0 + 0.1 * jax.random.normal(keys[7], (C2,), dtype=jnp.float32)
    bn2_beta = 0.1 * jax.random.normal(keys[8], (C2,), dtype=jnp.float32)
    bn2_mean = 0.1 * jax.random.normal(keys[9], (C2,), dtype=jnp.float32)
    bn2_var = jnp.abs(1.0 + 0.1 * jax.random.normal(keys[10], (C2,),
                                                    dtype=jnp.float32))

    out = depth_separable_conv2d(x, dw_w, pw_w,
                                 bn1_gamma, bn1_beta, bn1_mean, bn1_var,
                                 bn2_gamma, bn2_beta, bn2_mean, bn2_var)
    out = jax.block_until_ready(out)

    ref = _reference(x, dw_w, pw_w,
                     bn1_gamma, bn1_beta, bn1_mean, bn1_var,
                     bn2_gamma, bn2_beta, bn2_mean, bn2_var)

    assert out.shape == (N, C2, H, W), out.shape
    max_err = float(jnp.max(jnp.abs(out - ref)))
    assert jnp.allclose(out, ref, atol=1e-3, rtol=1e-3), max_err

    print("KERNEL_OK")
</pallas_src>

<mosaic_0001>
module attributes {stable_mosaic.version = 11 : i64} {
  func.func @_dsconv_kernel(%arg0: i32, %arg1: memref<1x4x290xf32, #tpu.memory_space<vmem>>, %arg2: memref<9x4x1xf32, #tpu.memory_space<vmem>>, %arg3: memref<4x1xf32, #tpu.memory_space<vmem>>, %arg4: memref<32x4xf32, #tpu.memory_space<vmem>>, %arg5: memref<32x1xf32, #tpu.memory_space<vmem>>, %arg6: memref<1x32x256xf32, #tpu.memory_space<vmem>>) attributes {dimension_semantics = [#tpu.dimension_semantics<parallel>], iteration_bounds = array<i64: 2>, scalar_prefetch = 0 : i64, scratch_operands = 0 : i64, tpu.core_type = #tpu.core_type<tc>, window_params = [{transform_indices = @transform_0, window_bounds = array<i64: 1, 4, 290>}, {pipeline_mode = #tpu.pipeline_mode<synchronous>, transform_indices = @transform_1, window_bounds = array<i64: 9, 4, 1>}, {pipeline_mode = #tpu.pipeline_mode<synchronous>, transform_indices = @transform_2, window_bounds = array<i64: 4, 1>}, {pipeline_mode = #tpu.pipeline_mode<synchronous>, transform_indices = @transform_3, window_bounds = array<i64: 32, 4>}, {pipeline_mode = #tpu.pipeline_mode<synchronous>, transform_indices = @transform_4, window_bounds = array<i64: 32, 1>}, {transform_indices = @transform_5, window_bounds = array<i64: 1, 32, 256>}]} {
    %c0 = arith.constant 0 : index
    %c0_0 = arith.constant 0 : index
    %c0_1 = arith.constant 0 : index
    %0 = vector.load %arg1[%c0, %c0_0, %c0_1] : memref<1x4x290xf32, #tpu.memory_space<vmem>>, vector<1x4x290xf32>
    %1 = vector.shape_cast %0 : vector<1x4x290xf32> to vector<4x290xf32>
    %2 = tpu.iota {dimensions = array<i32: 1>} : vector<1x256xi32>
    %c16_i32 = arith.constant 16 : i32
    %c0_i32 = arith.constant 0 : i32
    %3 = arith.cmpi eq, %c16_i32, %c0_i32 : i32
    %c1_i32 = arith.constant 1 : i32
    %4 = arith.select %3, %c1_i32, %c16_i32 : i32
    %5 = vector.broadcast %4 : i32 to vector<1x256xi32>
    %6 = arith.remsi %2, %5 : vector<1x256xi32>
    %c0_i32_2 = arith.constant 0 : i32
    %7 = vector.broadcast %c0_i32_2 : i32 to vector<1x256xi32>
    %8 = arith.cmpi ne, %6, %7 : vector<1x256xi32>
    %c0_i32_3 = arith.constant 0 : i32
    %9 = vector.broadcast %c0_i32_3 : i32 to vector<1x256xi32>
    %10 = arith.cmpi slt, %6, %9 : vector<1x256xi32>
    %c0_i32_4 = arith.constant 0 : i32
    %11 = arith.cmpi slt, %4, %c0_i32_4 : i32
    %12 = vector.broadcast %11 : i1 to vector<1x256xi1>
    %13 = vector.broadcast %12 : vector<1x256xi1> to vector<1x256xi1>
    %14 = arith.xori %10, %13 : vector<1x256xi1>
    %15 = arith.andi %14, %8 : vector<1x256xi1>
    %16 = vector.broadcast %4 : i32 to vector<1x256xi32>
    %17 = arith.addi %6, %16 : vector<1x256xi32>
    %18 = arith.select %15, %17, %6 : vector<1x256xi1>, vector<1x256xi32>
    %c0_i32_5 = arith.constant 0 : i32
    %19 = vector.broadcast %c0_i32_5 : i32 to vector<1x256xi32>
    %20 = arith.cmpi ne, %18, %19 : vector<1x256xi32>
    %21 = arith.extui %20 : vector<1x256xi1> to vector<1x256xi32>
    %22 = arith.sitofp %21 : vector<1x256xi32> to vector<1x256xf32>
    %c15_i32 = arith.constant 15 : i32
    %23 = vector.broadcast %c15_i32 : i32 to vector<1x256xi32>
    %24 = arith.cmpi ne, %18, %23 : vector<1x256xi32>
    %25 = arith.extui %24 : vector<1x256xi1> to vector<1x256xi32>
    %26 = arith.sitofp %25 : vector<1x256xi32> to vector<1x256xf32>
    %c1 = arith.constant 1 : index
    %c0_6 = arith.constant 0 : index
    %c0_7 = arith.constant 0 : index
    %27 = vector.load %arg2[%c1, %c0_6, %c0_7] : memref<9x4x1xf32, #tpu.memory_space<vmem>>, vector<1x4x1xf32>
    %28 = vector.shape_cast %27 : vector<1x4x1xf32> to vector<4x1xf32>
    %29 = vector.extract_strided_slice %1 {offsets = [0, 1], sizes = [4, 256], strides = [1, 1]} : vector<4x290xf32> to vector<4x256xf32>
    %30 = vector.broadcast %28 : vector<4x1xf32> to vector<4x256xf32>
    %31 = arith.mulf %30, %29 : vector<4x256xf32>
    %c4 = arith.constant 4 : index
    %c0_8 = arith.constant 0 : index
    %c0_9 = arith.constant 0 : index
    %32 = vector.load %arg2[%c4, %c0_8, %c0_9] : memref<9x4x1xf32, #tpu.memory_space<vmem>>, vector<1x4x1xf32>
    %33 = vector.shape_cast %32 : vector<1x4x1xf32> to vector<4x1xf32>
    %34 = vector.extract_strided_slice %1 {offsets = [0, 17], sizes = [4, 256], strides = [1, 1]} : vector<4x290xf32> to vector<4x256xf32>
    %35 = vector.broadcast %33 : vector<4x1xf32> to vector<4x256xf32>
    %36 = arith.mulf %35, %34 : vector<4x256xf32>
    %37 = arith.addf %31, %36 : vector<4x256xf32>
    %c7 = arith.constant 7 : index
    %c0_10 = arith.constant 0 : index
    %c0_11 = arith.constant 0 : index
    %38 = vector.load %arg2[%c7, %c0_10, %c0_11] : memref<9x4x1xf32, #tpu.memory_space<vmem>>, vector<1x4x1xf32>
    %39 = vector.shape_cast %38 : vector<1x4x1xf32> to vector<4x1xf32>
    %40 = vector.extract_strided_slice %1 {offsets = [0, 33], sizes = [4, 256], strides = [1, 1]} : vector<4x290xf32> to vector<4x256xf32>
    %41 = vector.broadcast %39 : vector<4x1xf32> to vector<4x256xf32>
    %42 = arith.mulf %41, %40 : vector<4x256xf32>
    %43 = arith.addf %37, %42 : vector<4x256xf32>
    %c0_12 = arith.constant 0 : index
    %c0_13 = arith.constant 0 : index
    %c0_14 = arith.constant 0 : index
    %44 = vector.load %arg2[%c0_12, %c0_13, %c0_14] : memref<9x4x1xf32, #tpu.memory_space<vmem>>, vector<1x4x1xf32>
    %45 = vector.shape_cast %44 : vector<1x4x1xf32> to vector<4x1xf32>
    %46 = vector.extract_strided_slice %1 {offsets = [0, 0], sizes = [4, 256], strides = [1, 1]} : vector<4x290xf32> to vector<4x256xf32>
    %47 = vector.broadcast %45 : vector<4x1xf32> to vector<4x256xf32>
    %48 = arith.mulf %47, %46 : vector<4x256xf32>
    %c3 = arith.constant 3 : index
    %c0_15 = arith.constant 0 : index
    %c0_16 = arith.constant 0 : index
    %49 = vector.load %arg2[%c3, %c0_15, %c0_16] : memref<9x4x1xf32, #tpu.memory_space<vmem>>, vector<1x4x1xf32>
    %50 = vector.shape_cast %49 : vector<1x4x1xf32> to vector<4x1xf32>
    %51 = vector.extract_strided_slice %1 {offsets = [0, 16], sizes = [4, 256], strides = [1, 1]} : vector<4x290xf32> to vector<4x256xf32>
    %52 = vector.broadcast %50 : vector<4x1xf32> to vector<4x256xf32>
    %53 = arith.mulf %52, %51 : vector<4x256xf32>
    %54 = arith.addf %48, %53 : vector<4x256xf32>
    %c6 = arith.constant 6 : index
    %c0_17 = arith.constant 0 : index
    %c0_18 = arith.constant 0 : index
    %55 = vector.load %arg2[%c6, %c0_17, %c0_18] : memref<9x4x1xf32, #tpu.memory_space<vmem>>, vector<1x4x1xf32>
    %56 = vector.shape_cast %55 : vector<1x4x1xf32> to vector<4x1xf32>
    %57 = vector.extract_strided_slice %1 {offsets = [0, 32], sizes = [4, 256], strides = [1, 1]} : vector<4x290xf32> to vector<4x256xf32>
    %58 = vector.broadcast %56 : vector<4x1xf32> to vector<4x256xf32>
    %59 = arith.mulf %58, %57 : vector<4x256xf32>
    %60 = arith.addf %54, %59 : vector<4x256xf32>
    %c2 = arith.constant 2 : index
    %c0_19 = arith.constant 0 : index
    %c0_20 = arith.constant 0 : index
    %61 = vector.load %arg2[%c2, %c0_19, %c0_20] : memref<9x4x1xf32, #tpu.memory_space<vmem>>, vector<1x4x1xf32>
    %62 = vector.shape_cast %61 : vector<1x4x1xf32> to vector<4x1xf32>
    %63 = vector.extract_strided_slice %1 {offsets = [0, 2], sizes = [4, 256], strides = [1, 1]} : vector<4x290xf32> to vector<4x256xf32>
    %64 = vector.broadcast %62 : vector<4x1xf32> to vector<4x256xf32>
    %65 = arith.mulf %64, %63 : vector<4x256xf32>
    %c5 = arith.constant 5 : index
    %c0_21 = arith.constant 0 : index
    %c0_22 = arith.constant 0 : index
    %66 = vector.load %arg2[%c5, %c0_21, %c0_22] : memref<9x4x1xf32, #tpu.memory_space<vmem>>, vector<1x4x1xf32>
    %67 = vector.shape_cast %66 : vector<1x4x1xf32> to vector<4x1xf32>
    %68 = vector.extract_strided_slice %1 {offsets = [0, 18], sizes = [4, 256], strides = [1, 1]} : vector<4x290xf32> to vector<4x256xf32>
    %69 = vector.broadcast %67 : vector<4x1xf32> to vector<4x256xf32>
    %70 = arith.mulf %69, %68 : vector<4x256xf32>
    %71 = arith.addf %65, %70 : vector<4x256xf32>
    %c8 = arith.constant 8 : index
    %c0_23 = arith.constant 0 : index
    %c0_24 = arith.constant 0 : index
    %72 = vector.load %arg2[%c8, %c0_23, %c0_24] : memref<9x4x1xf32, #tpu.memory_space<vmem>>, vector<1x4x1xf32>
    %73 = vector.shape_cast %72 : vector<1x4x1xf32> to vector<4x1xf32>
    %74 = vector.extract_strided_slice %1 {offsets = [0, 34], sizes = [4, 256], strides = [1, 1]} : vector<4x290xf32> to vector<4x256xf32>
    %75 = vector.broadcast %73 : vector<4x1xf32> to vector<4x256xf32>
    %76 = arith.mulf %75, %74 : vector<4x256xf32>
    %77 = arith.addf %71, %76 : vector<4x256xf32>
    %78 = vector.broadcast %22 : vector<1x256xf32> to vector<4x256xf32>
    %79 = arith.mulf %78, %60 : vector<4x256xf32>
    %80 = arith.addf %43, %79 : vector<4x256xf32>
    %81 = vector.broadcast %26 : vector<1x256xf32> to vector<4x256xf32>
    %82 = arith.mulf %81, %77 : vector<4x256xf32>
    %83 = arith.addf %80, %82 : vector<4x256xf32>
    %c0_25 = arith.constant 0 : index
    %c0_26 = arith.constant 0 : index
    %84 = vector.load %arg3[%c0_25, %c0_26] : memref<4x1xf32, #tpu.memory_space<vmem>>, vector<4x1xf32>
    %85 = vector.broadcast %84 : vector<4x1xf32> to vector<4x256xf32>
    %86 = arith.addf %83, %85 : vector<4x256xf32>
    %cst = arith.constant 3.000000e+00 : f32
    %87 = vector.broadcast %cst : f32 to vector<4x256xf32>
    %88 = arith.addf %86, %87 : vector<4x256xf32>
    %cst_27 = arith.constant 0.000000e+00 : f32
    %cst_28 = arith.constant 6.000000e+00 : f32
    %89 = vector.broadcast %cst_27 : f32 to vector<4x256xf32>
    %90 = arith.maximumf %89, %88 : vector<4x256xf32>
    %91 = vector.broadcast %cst_28 : f32 to vector<4x256xf32>
    %92 = arith.minimumf %91, %90 : vector<4x256xf32>
    %93 = arith.mulf %86, %92 : vector<4x256xf32>
    %cst_29 = arith.constant 0.166666672 : f32
    %94 = vector.broadcast %cst_29 : f32 to vector<4x256xf32>
    %95 = arith.mulf %93, %94 : vector<4x256xf32>
    %c0_30 = arith.constant 0 : index
    %c0_31 = arith.constant 0 : index
    %96 = vector.load %arg4[%c0_30, %c0_31] : memref<32x4xf32, #tpu.memory_space<vmem>>, vector<32x4xf32>
    %cst_32 = arith.constant dense<0.000000e+00> : vector<32x256xf32>
    %97 = tpu.matmul %96, %95, %cst_32 {dimension_numbers = #tpu.dot_dimension_numbers<[1], [0], [0], [1], [0, 0, 1, 1], [], []>, precision = #tpu.contract_precision<fp32>} : vector<32x4xf32>, vector<4x256xf32>, vector<32x256xf32> -> vector<32x256xf32>
    %c0_33 = arith.constant 0 : index
    %c0_34 = arith.constant 0 : index
    %98 = vector.load %arg5[%c0_33, %c0_34] : memref<32x1xf32, #tpu.memory_space<vmem>>, vector<32x1xf32>
    %99 = vector.broadcast %98 : vector<32x1xf32> to vector<32x256xf32>
    %100 = arith.addf %97, %99 : vector<32x256xf32>
    %cst_35 = arith.constant 3.000000e+00 : f32
    %101 = vector.broadcast %cst_35 : f32 to vector<32x256xf32>
    %102 = arith.addf %100, %101 : vector<32x256xf32>
    %cst_36 = arith.constant 0.000000e+00 : f32
    %cst_37 = arith.constant 6.000000e+00 : f32
    %103 = vector.broadcast %cst_36 : f32 to vector<32x256xf32>
    %104 = arith.maximumf %103, %102 : vector<32x256xf32>
    %105 = vector.broadcast %cst_37 : f32 to vector<32x256xf32>
    %106 = arith.minimumf %105, %104 : vector<32x256xf32>
    %107 = arith.mulf %100, %106 : vector<32x256xf32>
    %cst_38 = arith.constant 0.166666672 : f32
    %108 = vector.broadcast %cst_38 : f32 to vector<32x256xf32>
    %109 = arith.mulf %107, %108 : vector<32x256xf32>
    %c0_39 = arith.constant 0 : index
    %c0_40 = arith.constant 0 : index
    %c0_41 = arith.constant 0 : index
    %110 = vector.load %arg6[%c0_39, %c0_40, %c0_41] : memref<1x32x256xf32, #tpu.memory_space<vmem>>, vector<1x32x256xf32>
    %111 = vector.shape_cast %110 : vector<1x32x256xf32> to vector<32x256xf32>
    %112 = vector.shape_cast %109 : vector<32x256xf32> to vector<1x32x256xf32>
    tpu.vector_store %arg6[%c0_39, %c0_40, %c0_41], %112 {strides = array<i32>} : memref<1x32x256xf32, #tpu.memory_space<vmem>>, vector<1x32x256xf32>,
    return
  }
  func.func @transform_0(%arg0: i32) -> (i32, i32, i32) {
    %c0_i32 = arith.constant 0 : i32
    %c0_i32_0 = arith.constant 0 : i32
    %c0_i32_1 = arith.constant 0 : i32
    return %arg0, %c0_i32, %c0_i32_0 : i32, i32, i32
  }
  func.func @transform_1(%arg0: i32) -> (i32, i32, i32) {
    %c0_i32 = arith.constant 0 : i32
    %c0_i32_0 = arith.constant 0 : i32
    %c0_i32_1 = arith.constant 0 : i32
    %c0_i32_2 = arith.constant 0 : i32
    return %c0_i32, %c0_i32_0, %c0_i32_1 : i32, i32, i32
  }
  func.func @transform_2(%arg0: i32) -> (i32, i32) {
    %c0_i32 = arith.constant 0 : i32
    %c0_i32_0 = arith.constant 0 : i32
    %c0_i32_1 = arith.constant 0 : i32
    return %c0_i32, %c0_i32_0 : i32, i32
  }
  func.func @transform_3(%arg0: i32) -> (i32, i32) {
    %c0_i32 = arith.constant 0 : i32
    %c0_i32_0 = arith.constant 0 : i32
    %c0_i32_1 = arith.constant 0 : i32
    return %c0_i32, %c0_i32_0 : i32, i32
  }
  func.func @transform_4(%arg0: i32) -> (i32, i32) {
    %c0_i32 = arith.constant 0 : i32
    %c0_i32_0 = arith.constant 0 : i32
    %c0_i32_1 = arith.constant 0 : i32
    return %c0_i32, %c0_i32_0 : i32, i32
  }
  func.func @transform_5(%arg0: i32) -> (i32, i32, i32) {
    %c0_i32 = arith.constant 0 : i32
    %c0_i32_0 = arith.constant 0 : i32
    %c0_i32_1 = arith.constant 0 : i32
    return %arg0, %c0_i32, %c0_i32_0 : i32, i32, i32
  }
}

</mosaic_0001>

<llo_original>
// kernel: tpu_custom_call.1
$region0: #{tpu_custom_call.1}
  #allocation0 [shape = 'u32[]', space=smem, size = 0x4, offset = 0x4, fixed_abs, tag = 'smem constant byte address 0x4 - core index']
  #allocation1 [shape = 'u32[144,128]{1,0:T(1,128)}', space=vmem, size = 0x12000, scoped, tag = 'internal scratch']
  %s0 = inlined_call_operand.vmem [shape: f32[2,4,290], index: 0, kind: input, shape index: {}]
  %s1 = inlined_call_operand.vmem [shape: f32[9,4,1], index: 1, kind: input, shape index: {}]
  %s2 = inlined_call_operand.vmem [shape: f32[4,1], index: 2, kind: input, shape index: {}]
  %s3 = inlined_call_operand.vmem [shape: f32[32,4], index: 3, kind: input, shape index: {}]
  %s4 = inlined_call_operand.vmem [shape: f32[32,1], index: 4, kind: input, shape index: {}]
  %s5 = inlined_call_operand.hbm [shape: f32[2,32,256], index: 5, kind: output, shape index: {}]
  %s6 = sld [smem:[#allocation0]]
  $region53: #{tpu_custom_call.1} parent=0
    _
  %s8 = ssub.s32 1, %s6
  %s9 = scalar_select 0, %s8, %s6
  $region1: #{tpu_custom_call.1} parent=0
    #allocation2 [shape = 'u8[65536]{0}', space=vmem, size = 0x10000, scoped, tag = 'output window, operand 0']
    #allocation3 [shape = 's32[2]{0}', space=sflag, size = 0x8, scoped, tag = 'scoped memory for tpu_custom_call.1']
    %10 = vsyncpa [#allocation3], 0
    %s11 = scalar_lea.sflag [#allocation3], 1
    %12 = vsyncpa %s11, 0
    loop: start=0, step=1, limit=4
    $region2: #{tpu_custom_call.1} parent=1 // loop_pre_header
      _
    $region3: #{tpu_custom_call.1} parent=1 // loop_header
      %s14 = sphi 0, %s18
      %p15 = scmp.ge.s32.totalorder %s14, 4
      %s24 = sphi 0, %s26
      %s27 = sphi 0, %s24
      %s28 = sphi 0, %s27
      %s44 = sphi 0, %s28
      %s48 = sphi 0, %s48
      %s50 = sphi 0, %s48
      %s51 = sphi 0, %s50
      %s65 = sphi 0, %s51
      %s69 = sphi 0, %s69
      %s71 = sphi 0, %s69
      %s72 = sphi 0, %s71
      %s86 = sphi 0, %s72
      %s90 = sphi 0, %s90
      %s92 = sphi 0, %s90
      %s93 = sphi 0, %s92
      %s107 = sphi 0, %s93
      %s111 = sphi 0, %s111
      %s113 = sphi 0, %s111
      %s114 = sphi 0, %s113
      %s128 = sphi 0, %s114
      %s134 = sphi 0, %s136
      %s137 = sphi 0, %s134
      %s138 = sphi 0, %s137
      %s154 = sphi 0, %s138
    $region4: #{tpu_custom_call.1} parent=1 // loop_header_branch
      %17 = sbr.rel (%p15) target = $region8
    $region5: #{tpu_custom_call.1} parent=1 // loop_body
      %s19 = ssub.s32 %s14, 1
      %s20 = ssub.s32 %s14, 2
      %s21 = sadd.s32 %s14, 1
      %s22 = ssub.s32 %s14, %s21
      %p23 = scmp.eq.s32.totalorder %s22, 0
      %s25 = sadd.s32 %s24, 1
      %s26 = scalar_select %p23, %s24, %s25
      %p29 = pneg %p23
      %p30 = scmp.eq.s32.totalorder %s14, 1
      %p31 = por %p29, %p30
      %p32 = scmp.ne.s32.totalorder %s24, %s27
      %p33 = scmp.eq.s32.totalorder %s14, 0
      %p34 = por %p32, %p33
      %p35 = scmp.ne.s32.totalorder %s24, %s27
      %p36 = scmp.eq.s32.totalorder %s19, 1
      %p37 = por %p35, %p36
      %p38 = scmp.ne.s32.totalorder %s27, %s28
      %p39 = scmp.eq.s32.totalorder %s19, 0
      %p40 = por %p38, %p39
      %p41 = scmp.ne.s32.totalorder %s27, %s28
      %p42 = scmp.eq.s32.totalorder %s20, 1
      %p43 = por %p41, %p42
      %p45 = scmp.ne.s32.totalorder %s28, %s44
      %p46 = scmp.eq.s32.totalorder %s20, 0
      %p47 = por %p45, %p46
      %s49 = sadd.s32 %s48, 1
      %p52 = scmp.eq.s32.totalorder %s14, 1
      %p53 = scmp.ne.s32.totalorder %s48, %s50
      %p54 = scmp.eq.s32.totalorder %s14, 0
      %p55 = por %p53, %p54
      %p56 = scmp.ne.s32.totalorder %s48, %s50
      %p57 = scmp.eq.s32.totalorder %s19, 1
      %p58 = por %p56, %p57
      %p59 = scmp.ne.s32.totalorder %s50, %s51
      %p60 = scmp.eq.s32.totalorder %s19, 0
      %p61 = por %p59, %p60
      %p62 = scmp.ne.s32.totalorder %s50, %s51
      %p63 = scmp.eq.s32.totalorder %s20, 1
      %p64 = por %p62, %p63
      %p66 = scmp.ne.s32.totalorder %s51, %s65
      %p67 = scmp.eq.s32.totalorder %s20, 0
      %p68 = por %p66, %p67
      %s70 = sadd.s32 %s69, 1
      %p73 = scmp.eq.s32.totalorder %s14, 1
      %p74 = scmp.ne.s32.totalorder %s69, %s71
      %p75 = scmp.eq.s32.totalorder %s14, 0
      %p76 = por %p74, %p75
      %p77 = scmp.ne.s32.totalorder %s69, %s71
      %p78 = scmp.eq.s32.totalorder %s19, 1
      %p79 = por %p77, %p78
      %p80 = scmp.ne.s32.totalorder %s71, %s72
      %p81 = scmp.eq.s32.totalorder %s19, 0
      %p82 = por %p80, %p81
      %p83 = scmp.ne.s32.totalorder %s71, %s72
      %p84 = scmp.eq.s32.totalorder %s20, 1
      %p85 = por %p83, %p84
      %p87 = scmp.ne.s32.totalorder %s72, %s86
      %p88 = scmp.eq.s32.totalorder %s20, 0
      %p89 = por %p87, %p88
      %s91 = sadd.s32 %s90, 1
      %p94 = scmp.eq.s32.totalorder %s14, 1
      %p95 = scmp.ne.s32.totalorder %s90, %s92
      %p96 = scmp.eq.s32.totalorder %s14, 0
      %p97 = por %p95, %p96
      %p98 = scmp.ne.s32.totalorder %s90, %s92
      %p99 = scmp.eq.s32.totalorder %s19, 1
      %p100 = por %p98, %p99
      %p101 = scmp.ne.s32.totalorder %s92, %s93
      %p102 = scmp.eq.s32.totalorder %s19, 0
      %p103 = por %p101, %p102
      %p104 = scmp.ne.s32.totalorder %s92, %s93
      %p105 = scmp.eq.s32.totalorder %s20, 1
      %p106 = por %p104, %p105
      %p108 = scmp.ne.s32.totalorder %s93, %s107
      %p109 = scmp.eq.s32.totalorder %s20, 0
      %p110 = por %p108, %p109
      %s112 = sadd.s32 %s111, 1
      %p115 = scmp.eq.s32.totalorder %s14, 1
      %p116 = scmp.ne.s32.totalorder %s111, %s113
      %p117 = scmp.eq.s32.totalorder %s14, 0
      %p118 = por %p116, %p117
      %p119 = scmp.ne.s32.totalorder %s111, %s113
      %p120 = scmp.eq.s32.totalorder %s19, 1
      %p121 = por %p119, %p120
      %p122 = scmp.ne.s32.totalorder %s113, %s114
      %p123 = scmp.eq.s32.totalorder %s19, 0
      %p124 = por %p122, %p123
      %p125 = scmp.ne.s32.totalorder %s113, %s114
      %p126 = scmp.eq.s32.totalorder %s20, 1
      %p127 = por %p125, %p126
      %p129 = scmp.ne.s32.totalorder %s114, %s128
      %p130 = scmp.eq.s32.totalorder %s20, 0
      %p131 = por %p129, %p130
      %s132 = ssub.s32 %s14, %s21
      %p133 = scmp.eq.s32.totalorder %s132, 0
      %s135 = sadd.s32 %s134, 1
      %s136 = scalar_select %p133, %s134, %s135
      %p139 = pneg %p133
      %p140 = scmp.eq.s32.totalorder %s14, 1
      %p141 = por %p139, %p140
      %p142 = scmp.ne.s32.totalorder %s134, %s137
      %p143 = scmp.eq.s32.totalorder %s14, 0
      %p144 = por %p142, %p143
      %p145 = scmp.ne.s32.totalorder %s134, %s137
      %p146 = scmp.eq.s32.totalorder %s19, 1
      %p147 = por %p145, %p146
      %p148 = scmp.ne.s32.totalorder %s137, %s138
      %p149 = scmp.eq.s32.totalorder %s19, 0
      %p150 = por %p148, %p149
      %p151 = scmp.ne.s32.totalorder %s137, %s138
      %p152 = scmp.eq.s32.totalorder %s20, 1
      %p153 = por %p151, %p152
      %p155 = scmp.ne.s32.totalorder %s138, %s154
      %p156 = scmp.eq.s32.totalorder %s20, 0
      %p157 = por %p155, %p156
      %p158 = scmp.le.s32.totalorder 1, %s14
      %p159 = scmp.lt.s32.totalorder %s14, 3
      %p160 = pnand %p158, %p159
      %p161 = pneg %p160
      // Predicated region
      $region9: #{tpu_custom_call.1} parent=5 // pred_check
        _
      $region10: #{tpu_custom_call.1} parent=5 // pred_check_branch
        %163 = sbr.rel (%p160) target = $region12
      $region11: #{tpu_custom_call.1} parent=5 // pred_region
        %s164 = ssub.s32 %s14, 1
        // Predicated region
        $region13: #{tpu_custom_call.1} parent=11 // pred_check
          %p165 = pneg %p61
        $region14: #{tpu_custom_call.1} parent=11 // pred_check_branch
          %167 = sbr.rel (%p165) target = $region16
        $region15: #{tpu_custom_call.1} parent=11 // pred_region
          _
        $region16: #{tpu_custom_call.1} parent=11 // pred_fallthru
          _
        // Predicated region
        $region17: #{tpu_custom_call.1} parent=11 // pred_check
          %p168 = pneg %p82
        $region18: #{tpu_custom_call.1} parent=11 // pred_check_branch
          %170 = sbr.rel (%p168) target = $region20
        $region19: #{tpu_custom_call.1} parent=11 // pred_region
          _
        $region20: #{tpu_custom_call.1} parent=11 // pred_fallthru
          _
        // Predicated region
        $region21: #{tpu_custom_call.1} parent=11 // pred_check
          %p171 = pneg %p103
        $region22: #{tpu_custom_call.1} parent=11 // pred_check_branch
          %173 = sbr.rel (%p171) target = $region24
        $region23: #{tpu_custom_call.1} parent=11 // pred_region
          _
        $region24: #{tpu_custom_call.1} parent=11 // pred_fallthru
          _
        // Predicated region
        $region25: #{tpu_custom_call.1} parent=11 // pred_check
          %p174 = pneg %p124
        $region26: #{tpu_custom_call.1} parent=11 // pred_check_branch
          %176 = sbr.rel (%p174) target = $region28
        $region27: #{tpu_custom_call.1} parent=11 // pred_region
          _
        $region28: #{tpu_custom_call.1} parent=11 // pred_fallthru
          _
      $region12: #{tpu_custom_call.1} parent=5 // pred_fallthru
        _
      %p177 = scmp.lt.s32.totalorder %s14, 2
      // Predicated region
      $region29: #{tpu_custom_call.1} parent=5 // pred_check
        %p178 = pneg %p177
      $region30: #{tpu_custom_call.1} parent=5 // pred_check_branch
        %180 = sbr.rel (%p178) target = $region32
      $region31: #{tpu_custom_call.1} parent=5 // pred_region
        // Predicated region
        $region33: #{tpu_custom_call.1} parent=31 // pred_check
          %p181 = pneg %p34
        $region34: #{tpu_custom_call.1} parent=31 // pred_check_branch
          %183 = sbr.rel (%p181) target = $region36
        $region35: #{tpu_custom_call.1} parent=31 // pred_region
          %p184 = scmp.lt.s32.totalorder %s14, 1
          %s185 = scalar_select %p184, %s14, 1
          %s186 = smul.addr %s185, 3
          %s187 = smul.addr %s186, 4
          %s188 = scalar_lea.vmem %s0, %s187
        $region36: #{tpu_custom_call.1} parent=31 // pred_fallthru
          _
      $region32: #{tpu_custom_call.1} parent=5 // pred_fallthru
        _
      %p189 = scmp.le.s32.totalorder 1, %s14
      %p190 = scmp.lt.s32.totalorder %s14, 3
      %p191 = pnand %p189, %p190
      %p192 = pneg %p191
      // Predicated region
      $region37: #{tpu_custom_call.1} parent=5 // pred_check
        _
      $region38: #{tpu_custom_call.1} parent=5 // pred_check_branch
        %194 = sbr.rel (%p191) target = $region40
      $region39: #{tpu_custom_call.1} parent=5 // pred_region
        %s195 = ssub.s32 %s14, 1
        %p196 = scmp.lt.s32.totalorder %s19, 1
        %s197 = scalar_select %p196, %s19, 1
        %s198 = smul.addr %s197, 3
        %s199 = smul.addr %s198, 4
        %s200 = scalar_lea.vmem %s0, %s199
        %p201 = pneg %p40
        %p202 = pneg %p37
        %p203 = pneg %p61
        %p204 = pneg %p58
        %p205 = pneg %p82
        %p206 = pneg %p79
        %p207 = pneg %p103
        %p208 = pneg %p100
        %p209 = pneg %p124
        %p210 = pneg %p121
        %p211 = pneg %p150
        %p212 = pneg %p147
        %s213 = sand.u32 %s137, 1
        %s214 = scalar_lea.sflag [#allocation3], %s213
        %s215 = sand.u32 %s137, 1
        %s216 = smul.addr %s215, 64
        %s217 = scalar_lea.vmem [#allocation2], %s216
        %p218 = scmp.lt.s32.totalorder %s19, 1
        %s219 = scalar_select %p218, %s19, 1
        %s220 = smul.addr %s219, 3
        %s221 = smul.addr %s220, 4
        %s222 = scalar_lea.vmem %s0, %s221
        %v223 = vld [vmem:[%s222] sm:$0xff]
        %v224 = vld [vmem:[%s222 + $0x8] sm:$0xf]
        %v225 = vlaneseq
        %v226 = vand.u32 %v225, 127
        %v227 = vadd.s32 %v226, 128
        %vm228 = vcmp.lt.s32.totalorder %v226, 0
        %v229 = vsub.s32 0, %v226
        %v230 = vsel %vm228, %v229, %v226
        %v231 = vshrl.u32 %v230, 4
        %v232 = vand.u32 %v230, 15
        %v233 = vsub.s32 0, %v232
        %v234 = vsel %vm228, %v233, %v232
        %vm235 = vcmp.lt.s32.totalorder %v227, 0
        %v236 = vsub.s32 0, %v227
        %v237 = vsel %vm235, %v236, %v227
        %v238 = vshrl.u32 %v237, 4
        %v239 = vand.u32 %v237, 15
        %v240 = vsub.s32 0, %v239
        %v241 = vsel %vm235, %v240, %v239
        %vm242 = vcmp.ne.s32.totalorder %v234, 0
        %vm243 = vcmp.ne.s32.totalorder %v241, 0
        %vm244 = vcmp.lt.s32.totalorder %v234, 0
        %vm245 = vcmp.lt.s32.totalorder %v241, 0
        %vm246 = vmand %vm244, %vm242
        %vm247 = vmand %vm245, %vm243
        %v248 = vadd.s32 %v234, 16
        %v249 = vadd.s32 %v241, 16
        %v250 = vsel %vm246, %v248, %v234
        %v251 = vsel %vm247, %v249, %v241
        %vm252 = vcmp.ne.s32.totalorder %v250, 0
        %vm253 = vcmp.ne.s32.totalorder %v251, 0
        %v254 = vsel %vm252, 1, 0
        %v255 = vsel %vm253, 1, 0
        %v256 = vcvt.s32.f32 %v254
        %v257 = vcvt.s32.f32 %v255
        %vm258 = vcmp.ne.s32.totalorder %v250, 15
        %vm259 = vcmp.ne.s32.totalorder %v251, 15
        %v260 = vsel %vm258, 1, 0
        %v261 = vsel %vm259, 1, 0
        %v262 = vcvt.s32.f32 %v260
        %v263 = vcvt.s32.f32 %v261
        %s264 = scalar_lea.vmem %s1, 4
        %v265 = vld [vmem:[%s264] sm:$0xf]
        %267 = vset.pattern.permute.xlu0 0
        %268 = vperm.xlu0 %267, %v265
        %v269 = vpop.permute.xlu0 %268
        %v273 = vcombine.high %v223, %v223
        %274 = vrot.lane.b32.xlu0 %v223, 127
        %v275 = vpop.permute.xlu0 %274
        %276 = vrot.lane.b32.xlu0 %v273, 127
        %v277 = vpop.permute.xlu0 %276
        %278 = vrot.lane.b32.xlu0 %v224, 127
        %v279 = vpop.permute.xlu0 %278
        %vm280 = vcmask 1039360
        %v281 = vsel %vm280, %v275, %v277
        %v282 = vsel %vm280, %v277, %v279
        %v285 = vmul.f32 %v269, %v281
        %v286 = vmul.f32 %v269, %v282
        %s287 = scalar_lea.vmem %s1, 16
        %v288 = vld [vmem:[%s287] sm:$0xf]
        %290 = vset.pattern.permute.xlu0 0
        %291 = vperm.xlu0 %290, %v288
        %v292 = vpop.permute.xlu0 %291
        %294 = vrot.lane.b32.xlu0 %v223, 111
        %v295 = vpop.permute.xlu0 %294
        %296 = vrot.lane.b32.xlu0 %v273, 111
        %v297 = vpop.permute.xlu0 %296
        %298 = vrot.lane.b32.xlu0 %v224, 111
        %v299 = vpop.permute.xlu0 %298
        %vm300 = vcmask 908288
        %v301 = vsel %vm300, %v295, %v297
        %v302 = vsel %vm300, %v297, %v299
        %v305 = vmul.f32 %v292, %v301
        %v306 = vmul.f32 %v292, %v302
        %v307 = vadd.f32 %v285, %v305
        %v308 = vadd.f32 %v286, %v306
        %s309 = scalar_lea.vmem %s1, 28
        %v310 = vld [vmem:[%s309] sm:$0xf]
        %312 = vset.pattern.permute.xlu0 0
        %313 = vperm.xlu0 %312, %v310
        %v314 = vpop.permute.xlu0 %313
        %316 = vrot.lane.b32.xlu0 %v223, 95
        %v317 = vpop.permute.xlu0 %316
        %318 = vrot.lane.b32.xlu0 %v273, 95
        %v319 = vpop.permute.xlu0 %318
        %320 = vrot.lane.b32.xlu0 %v224, 95
        %v321 = vpop.permute.xlu0 %320
        %vm322 = vcmask 777216
        %v323 = vsel %vm322, %v317, %v319
        %v324 = vsel %vm322, %v319, %v321
        %v327 = vmul.f32 %v314, %v323
        %v328 = vmul.f32 %v314, %v324
        %v329 = vadd.f32 %v307, %v327
        %v330 = vadd.f32 %v308, %v328
        %v331 = vld [vmem:[%s1] sm:$0xf]
        %333 = vset.pattern.permute.xlu0 0
        %334 = vperm.xlu0 %333, %v331
        %v335 = vpop.permute.xlu0 %334
        %v338 = vmul.f32 %v335, %v223
        %v339 = vmul.f32 %v335, %v273
        %s340 = scalar_lea.vmem %s1, 12
        %v341 = vld [vmem:[%s340] sm:$0xf]
        %343 = vset.pattern.permute.xlu0 0
        %344 = vperm.xlu0 %343, %v341
        %v345 = vpop.permute.xlu0 %344
        %347 = vrot.lane.b32.xlu0 %v223, 112
        %v348 = vpop.permute.xlu0 %347
        %349 = vrot.lane.b32.xlu0 %v273, 112
        %v350 = vpop.permute.xlu0 %349
        %351 = vrot.lane.b32.xlu0 %v224, 112
        %v352 = vpop.permute.xlu0 %351
        %vm353 = vcmask 916480
        %v354 = vsel %vm353, %v348, %v350
        %v355 = vsel %vm353, %v350, %v352
        %v358 = vmul.f32 %v345, %v354
        %v359 = vmul.f32 %v345, %v355
        %v360 = vadd.f32 %v338, %v358
        %v361 = vadd.f32 %v339, %v359
        %s362 = scalar_lea.vmem %s1, 24
        %v363 = vld [vmem:[%s362] sm:$0xf]
        %365 = vset.pattern.permute.xlu0 0
        %366 = vperm.xlu0 %365, %v363
        %v367 = vpop.permute.xlu0 %366
        %369 = vrot.lane.b32.xlu0 %v223, 96
        %v370 = vpop.permute.xlu0 %369
        %371 = vrot.lane.b32.xlu0 %v273, 96
        %v372 = vpop.permute.xlu0 %371
        %373 = vrot.lane.b32.xlu0 %v224, 96
        %v374 = vpop.permute.xlu0 %373
        %vm375 = vcmask 785408
        %v376 = vsel %vm375, %v370, %v372
        %v377 = vsel %vm375, %v372, %v374
        %v380 = vmul.f32 %v367, %v376
        %v381 = vmul.f32 %v367, %v377
        %v382 = vadd.f32 %v360, %v380
        %v383 = vadd.f32 %v361, %v381
        %s384 = scalar_lea.vmem %s1, 8
        %v385 = vld [vmem:[%s384] sm:$0xf]
        %387 = vset.pattern.permute.xlu0 0
        %388 = vperm.xlu0 %387, %v385
        %v389 = vpop.permute.xlu0 %388
        %391 = vrot.lane.b32.xlu0 %v223, 126
        %v392 = vpop.permute.xlu0 %391
        %393 = vrot.lane.b32.xlu0 %v273, 126
        %v394 = vpop.permute.xlu0 %393
        %395 = vrot.lane.b32.xlu0 %v224, 126
        %v396 = vpop.permute.xlu0 %395
        %vm397 = vcmask 1031168
        %v398 = vsel %vm397, %v392, %v394
        %v399 = vsel %vm397, %v394, %v396
        %v402 = vmul.f32 %v389, %v398
        %v403 = vmul.f32 %v389, %v399
        %s404 = scalar_lea.vmem %s1, 20
        %v405 = vld [vmem:[%s404] sm:$0xf]
        %407 = vset.pattern.permute.xlu0 0
        %408 = vperm.xlu0 %407, %v405
        %v409 = vpop.permute.xlu0 %408
        %411 = vrot.lane.b32.xlu0 %v223, 110
        %v412 = vpop.permute.xlu0 %411
        %413 = vrot.lane.b32.xlu0 %v273, 110
        %v414 = vpop.permute.xlu0 %413
        %415 = vrot.lane.b32.xlu0 %v224, 110
        %v416 = vpop.permute.xlu0 %415
        %vm417 = vcmask 900096
        %v418 = vsel %vm417, %v412, %v414
        %v419 = vsel %vm417, %v414, %v416
        %v422 = vmul.f32 %v409, %v418
        %v423 = vmul.f32 %v409, %v419
        %v424 = vadd.f32 %v402, %v422
        %v425 = vadd.f32 %v403, %v423
        %s426 = scalar_lea.vmem %s1, 32
        %v427 = vld [vmem:[%s426] sm:$0xf]
        %429 = vset.pattern.permute.xlu0 0
        %430 = vperm.xlu0 %429, %v427
        %v431 = vpop.permute.xlu0 %430
        %433 = vrot.lane.b32.xlu0 %v223, 94
        %v434 = vpop.permute.xlu0 %433
        %435 = vrot.lane.b32.xlu0 %v273, 94
        %v436 = vpop.permute.xlu0 %435
        %437 = vrot.lane.b32.xlu0 %v224, 94
        %v438 = vpop.permute.xlu0 %437
        %vm439 = vcmask 769024
        %v440 = vsel %vm439, %v434, %v436
        %v441 = vsel %vm439, %v436, %v438
        %v444 = vmul.f32 %v431, %v440
        %v445 = vmul.f32 %v431, %v441
        %v446 = vadd.f32 %v424, %v444
        %v447 = vadd.f32 %v425, %v445
        %v448 = vmul.f32 %v256, %v382
        %v449 = vmul.f32 %v257, %v383
        %v450 = vadd.f32 %v329, %v448
        %v451 = vadd.f32 %v330, %v449
        %v452 = vmul.f32 %v262, %v446
        %v453 = vmul.f32 %v263, %v447
        %v454 = vadd.f32 %v450, %v452
        %v455 = vadd.f32 %v451, %v453
        %v456 = vld [vmem:[%s2] sm:$0xf]
        %458 = vset.pattern.permute.xlu0 0
        %459 = vperm.xlu0 %458, %v456
        %v460 = vpop.permute.xlu0 %459
        %v462 = vadd.f32 %v454, %v460
        %v463 = vadd.f32 %v455, %v460
        %v464 = vadd.f32 %v462, 3.0
        %v465 = vadd.f32 %v463, 3.0
        %v466 = vmax.f32 %v464, 0.0
        %v467 = vmax.f32 %v465, 0.0
        %v468 = vmin.f32 %v466, 6.0
        %v469 = vmin.f32 %v467, 6.0
        %v470 = vmul.f32 %v462, %v468
        %v471 = vmul.f32 %v463, %v469
        %v472 = vmul.f32 %v470, 0.16666667
        %v473 = vmul.f32 %v471, 0.16666667
        %v474 = vld [vmem:[%s3] sm:$0xff]
        %v475 = vld [vmem:[%s3 + $0x8] sm:$0xff]
        %v476 = vld [vmem:[%s3 + $0x10] sm:$0xff]
        %v477 = vld [vmem:[%s3 + $0x18] sm:$0xff]
        %v478 = vld [vmem:[%s4] sm:$0xff]
        %v479 = vld [vmem:[%s4 + $0x8] sm:$0xff]
        %v480 = vld [vmem:[%s4 + $0x10] sm:$0xff]
        %v481 = vld [vmem:[%s4 + $0x18] sm:$0xff]
        %483 = vset.pattern.permute.xlu0 0
        %484 = vperm.xlu0 %483, %v478
        %v485 = vpop.permute.xlu0 %484
        %488 = vset.pattern.permute.xlu0 0
        %489 = vperm.xlu0 %488, %v479
        %v490 = vpop.permute.xlu0 %489
        %493 = vset.pattern.permute.xlu0 0
        %494 = vperm.xlu0 %493, %v480
        %v495 = vpop.permute.xlu0 %494
        %498 = vset.pattern.permute.xlu0 0
        %499 = vperm.xlu0 %498, %v481
        %v500 = vpop.permute.xlu0 %499
        %vm502 = vcmask 31744
        %v504 = vsel %vm502, %v474, 0
        %v507 = vsel %vm502, %v475, 0
        %v510 = vsel %vm502, %v476, 0
        %v513 = vsel %vm502, %v477, 0
        %vm515 = vcmask 1043456
        %v517 = vsel %vm515, %v472, 0
        %v520 = vsel %vm515, %v473, 0
        %v522 = vand.u32 %v520, 4294901760
        %523 = vmatprep.subr.mxu0 %v522
        %v524 = vand.u32 %v517, 4294901760
        %525 = vmatpush1.msra.mxu0 %v524
        %526 = vmatprep.subr.mxu0 0.0
        %527 = vmatpush1.msra.mxu0 0.0
        %528 = vmatprep.subr.mxu0 0.0
        %529 = vmatpush1.msra.mxu0 0.0
        %530 = vmatprep.subr.mxu0 0.0
        %531 = vmatpush1.msra.mxu0 0.0
        %532 = vmatprep.subr.mxu0 0.0
        %533 = vmatpush1.msra.mxu0 0.0
        %534 = vmatprep.subr.mxu0 0.0
        %535 = vmatpush1.msra.mxu0 0.0
        %536 = vmatprep.subr.mxu0 0.0
        %537 = vmatpush1.msra.mxu0 0.0
        %538 = vmatprep.subr.mxu0 0.0
        %539 = vmatpush1.msra.mxu0 0.0
        %540 = vmatprep.subr.mxu0 0.0
        %541 = vmatpush1.msra.mxu0 0.0
        %542 = vmatprep.subr.mxu0 0.0
        %543 = vmatpush1.msra.mxu0 0.0
        %544 = vmatprep.subr.mxu0 0.0
        %545 = vmatpush1.msra.mxu0 0.0
        %546 = vmatprep.subr.mxu0 0.0
        %547 = vmatpush1.msra.mxu0 0.0
        %548 = vmatprep.subr.mxu0 0.0
        %549 = vmatpush1.msra.mxu0 0.0
        %550 = vmatprep.subr.mxu0 0.0
        %551 = vmatpush1.msra.mxu0 0.0
        %552 = vmatprep.subr.mxu0 0.0
        %553 = vmatpush1.msra.mxu0 0.0
        %554 = vmatprep.subr.mxu0 0.0
        %555 = vmatpush1.msra.mxu0 0.0
        %556 = vmatprep.subr.mxu0 0.0
        %557 = vmatpush1.msra.mxu0 0.0
        %558 = vmatprep.subr.mxu0 0.0
        %559 = vmatpush1.msra.mxu0 0.0
        %560 = vmatprep.subr.mxu0 0.0
        %561 = vmatpush1.msra.mxu0 0.0
        %562 = vmatprep.subr.mxu0 0.0
        %563 = vmatpush1.msra.mxu0 0.0
        %564 = vmatprep.subr.mxu0 0.0
        %565 = vmatpush1.msra.mxu0 0.0
        %566 = vmatprep.subr.mxu0 0.0
        %567 = vmatpush1.msra.mxu0 0.0
        %568 = vmatprep.subr.mxu0 0.0
        %569 = vmatpush1.msra.mxu0 0.0
        %570 = vmatprep.subr.mxu0 0.0
        %571 = vmatpush1.msra.mxu0 0.0
        %572 = vmatprep.subr.mxu0 0.0
        %573 = vmatpush1.msra.mxu0 0.0
        %574 = vmatprep.subr.mxu0 0.0
        %575 = vmatpush1.msra.mxu0 0.0
        %576 = vmatprep.subr.mxu0 0.0
        %577 = vmatpush1.msra.mxu0 0.0
        %578 = vmatprep.subr.mxu0 0.0
        %579 = vmatpush1.msra.mxu0 0.0
        %580 = vmatprep.subr.mxu0 0.0
        %581 = vmatpush1.msra.mxu0 0.0
        %582 = vmatprep.subr.mxu0 0.0
        %583 = vmatpush1.msra.mxu0 0.0
        %584 = vmatprep.subr.mxu0 0.0
        %585 = vmatpush1.msra.mxu0 0.0
        %586 = vmatprep.subr.mxu0 0.0
        %587 = vmatpush1.msra.mxu0 0.0
        %588 = vmatprep.mubr.f32.mxu0 0.0
        %v589 = vand.u32 %v504, 4294901760
        %v590 = vsub.f32 %v504, %v589
        %v591 = vand.u32 %v590, 4294901760
        %v592 = vsub.f32 %v590, %v591
        %v593 = vand.u32 %v592, 4294901760
        %594 = vmatmul.mubr.f32.gmra.mrb[0].mxu0 %v593
        %v595 = vpop.f32.mrb[0].mxu0
        %v596 = vadd.f32 %v485, %v595
        %v597 = vpop.f32.mrb[0].mxu0
        %v598 = vadd.f32 %v485, %v597
        %599 = vmatprep.mubr.f32.mxu0 0.0
        %v600 = vand.u32 %v507, 4294901760
        %v601 = vsub.f32 %v507, %v600
        %v602 = vand.u32 %v601, 4294901760
        %v603 = vsub.f32 %v601, %v602
        %v604 = vand.u32 %v603, 4294901760
        %605 = vmatmul.mubr.f32.gmra.mrb[0].mxu0 %v604
        %v606 = vpop.f32.mrb[0].mxu0
        %v607 = vadd.f32 %v490, %v606
        %v608 = vpop.f32.mrb[0].mxu0
        %v609 = vadd.f32 %v490, %v608
        %610 = vmatprep.mubr.f32.mxu0 0.0
        %v611 = vand.u32 %v510, 4294901760
        %v612 = vsub.f32 %v510, %v611
        %v613 = vand.u32 %v612, 4294901760
        %v614 = vsub.f32 %v612, %v613
        %v615 = vand.u32 %v614, 4294901760
        %616 = vmatmul.mubr.f32.gmra.mrb[0].mxu0 %v615
        %v617 = vpop.f32.mrb[0].mxu0
        %v618 = vadd.f32 %v495, %v617
        %v619 = vpop.f32.mrb[0].mxu0
        %v620 = vadd.f32 %v495, %v619
        %621 = vmatprep.mubr.f32.mxu0 0.0
        %v622 = vand.u32 %v513, 4294901760
        %v623 = vsub.f32 %v513, %v622
        %v624 = vand.u32 %v623, 4294901760
        %v625 = vsub.f32 %v623, %v624
        %v626 = vand.u32 %v625, 4294901760
        %627 = vmatmul.mubr.f32.gmra.mrb[0].mxu0 %v626
        %v628 = vpop.f32.mrb[0].mxu0
        %v629 = vadd.f32 %v500, %v628
        %v630 = vpop.f32.mrb[0].mxu0
        %v631 = vadd.f32 %v500, %v630
        %632 = vdwg.mxu0
        %v633 = vand.u32 %v520, 4294901760
        %v634 = vsub.f32 %v520, %v633
        %v635 = vand.u32 %v634, 4294901760
        %v636 = vsub.f32 %v634, %v635
        %v637 = vand.u32 %v636, 4294901760
        %638 = vmatprep.subr.mxu0 %v637
        %v639 = vand.u32 %v517, 4294901760
        %v640 = vsub.f32 %v517, %v639
        %v641 = vand.u32 %v640, 4294901760
        %v642 = vsub.f32 %v640, %v641
        %v643 = vand.u32 %v642, 4294901760
        %644 = vmatpush1.msra.mxu0 %v643
        %645 = vmatprep.subr.mxu0 0.0
        %646 = vmatpush1.msra.mxu0 0.0
        %647 = vmatprep.subr.mxu0 0.0
        %648 = vmatpush1.msra.mxu0 0.0
        %649 = vmatprep.subr.mxu0 0.0
        %650 = vmatpush1.msra.mxu0 0.0
        %651 = vmatprep.subr.mxu0 0.0
        %652 = vmatpush1.msra.mxu0 0.0
        %653 = vmatprep.subr.mxu0 0.0
        %654 = vmatpush1.msra.mxu0 0.0
        %655 = vmatprep.subr.mxu0 0.0
        %656 = vmatpush1.msra.mxu0 0.0
        %657 = vmatprep.subr.mxu0 0.0
        %658 = vmatpush1.msra.mxu0 0.0
        %659 = vmatprep.subr.mxu0 0.0
        %660 = vmatpush1.msra.mxu0 0.0
        %661 = vmatprep.subr.mxu0 0.0
        %662 = vmatpush1.msra.mxu0 0.0
        %663 = vmatprep.subr.mxu0 0.0
        %664 = vmatpush1.msra.mxu0 0.0
        %665 = vmatprep.subr.mxu0 0.0
        %666 = vmatpush1.msra.mxu0 0.0
        %667 = vmatprep.subr.mxu0 0.0
        %668 = vmatpush1.msra.mxu0 0.0
        %669 = vmatprep.subr.mxu0 0.0
        %670 = vmatpush1.msra.mxu0 0.0
        %671 = vmatprep.subr.mxu0 0.0
        %672 = vmatpush1.msra.mxu0 0.0
        %673 = vmatprep.subr.mxu0 0.0
        %674 = vmatpush1.msra.mxu0 0.0
        %675 = vmatprep.subr.mxu0 0.0
        %676 = vmatpush1.msra.mxu0 0.0
        %677 = vmatprep.subr.mxu0 0.0
        %678 = vmatpush1.msra.mxu0 0.0
        %679 = vmatprep.subr.mxu0 0.0
        %680 = vmatpush1.msra.mxu0 0.0
        %681 = vmatprep.subr.mxu0 0.0
        %682 = vmatpush1.msra.mxu0 0.0
        %683 = vmatprep.subr.mxu0 0.0
        %684 = vmatpush1.msra.mxu0 0.0
        %685 = vmatprep.subr.mxu0 0.0
        %686 = vmatpush1.msra.mxu0 0.0
        %687 = vmatprep.subr.mxu0 0.0
        %688 = vmatpush1.msra.mxu0 0.0
        %689 = vmatprep.subr.mxu0 0.0
        %690 = vmatpush1.msra.mxu0 0.0
        %691 = vmatprep.subr.mxu0 0.0
        %692 = vmatpush1.msra.mxu0 0.0
        %693 = vmatprep.subr.mxu0 0.0
        %694 = vmatpush1.msra.mxu0 0.0
        %695 = vmatprep.subr.mxu0 0.0
        %696 = vmatpush1.msra.mxu0 0.0
        %697 = vmatprep.subr.mxu0 0.0
        %698 = vmatpush1.msra.mxu0 0.0
        %699 = vmatprep.subr.mxu0 0.0
        %700 = vmatpush1.msra.mxu0 0.0
        %701 = vmatprep.subr.mxu0 0.0
        %702 = vmatpush1.msra.mxu0 0.0
        %703 = vmatprep.subr.mxu0 0.0
        %704 = vmatpush1.msra.mxu0 0.0
        %705 = vmatprep.subr.mxu0 0.0
        %706 = vmatpush1.msra.mxu0 0.0
        %707 = vmatprep.mubr.f32.mxu0 0.0
        %v708 = vand.u32 %v504, 4294901760
        %709 = vmatmul.mubr.f32.gmra.mrb[0].mxu0 %v708
        %v710 = vpop.f32.mrb[0].mxu0
        %v711 = vadd.f32 %v596, %v710
        %v712 = vpop.f32.mrb[0].mxu0
        %v713 = vadd.f32 %v598, %v712
        %714 = vmatprep.mubr.f32.mxu0 0.0
        %v715 = vand.u32 %v507, 4294901760
        %716 = vmatmul.mubr.f32.gmra.mrb[0].mxu0 %v715
        %v717 = vpop.f32.mrb[0].mxu0
        %v718 = vadd.f32 %v607, %v717
        %v719 = vpop.f32.mrb[0].mxu0
        %v720 = vadd.f32 %v609, %v719
        %721 = vmatprep.mubr.f32.mxu0 0.0
        %v722 = vand.u32 %v510, 4294901760
        %723 = vmatmul.mubr.f32.gmra.mrb[0].mxu0 %v722
        %v724 = vpop.f32.mrb[0].mxu0
        %v725 = vadd.f32 %v618, %v724
        %v726 = vpop.f32.mrb[0].mxu0
        %v727 = vadd.f32 %v620, %v726
        %728 = vmatprep.mubr.f32.mxu0 0.0
        %v729 = vand.u32 %v513, 4294901760
        %730 = vmatmul.mubr.f32.gmra.mrb[0].mxu0 %v729
        %v731 = vpop.f32.mrb[0].mxu0
        %v732 = vadd.f32 %v629, %v731
        %v733 = vpop.f32.mrb[0].mxu0
        %v734 = vadd.f32 %v631, %v733
        %735 = vdwg.mxu0
        %v736 = vand.u32 %v520, 4294901760
        %v737 = vsub.f32 %v520, %v736
        %738 = vmatprep.subr.mxu0 %v737
        %v739 = vand.u32 %v517, 4294901760
        %v740 = vsub.f32 %v517, %v739
        %741 = vmatpush1.msra.mxu0 %v740
        %742 = vmatprep.subr.mxu0 0.0
        %743 = vmatpush1.msra.mxu0 0.0
        %744 = vmatprep.subr.mxu0 0.0
        %745 = vmatpush1.msra.mxu0 0.0
        %746 = vmatprep.subr.mxu0 0.0
        %747 = vmatpush1.msra.mxu0 0.0
        %748 = vmatprep.subr.mxu0 0.0
        %749 = vmatpush1.msra.mxu0 0.0
        %750 = vmatprep.subr.mxu0 0.0
        %751 = vmatpush1.msra.mxu0 0.0
        %752 = vmatprep.subr.mxu0 0.0
        %753 = vmatpush1.msra.mxu0 0.0
        %754 = vmatprep.subr.mxu0 0.0
        %755 = vmatpush1.msra.mxu0 0.0
        %756 = vmatprep.subr.mxu0 0.0
        %757 = vmatpush1.msra.mxu0 0.0
        %758 = vmatprep.subr.mxu0 0.0
        %759 = vmatpush1.msra.mxu0 0.0
        %760 = vmatprep.subr.mxu0 0.0
        %761 = vmatpush1.msra.mxu0 0.0
        %762 = vmatprep.subr.mxu0 0.0
        %763 = vmatpush1.msra.mxu0 0.0
        %764 = vmatprep.subr.mxu0 0.0
        %765 = vmatpush1.msra.mxu0 0.0
        %766 = vmatprep.subr.mxu0 0.0
        %767 = vmatpush1.msra.mxu0 0.0
        %768 = vmatprep.subr.mxu0 0.0
        %769 = vmatpush1.msra.mxu0 0.0
        %770 = vmatprep.subr.mxu0 0.0
        %771 = vmatpush1.msra.mxu0 0.0
        %772 = vmatprep.subr.mxu0 0.0
        %773 = vmatpush1.msra.mxu0 0.0
        %774 = vmatprep.subr.mxu0 0.0
        %775 = vmatpush1.msra.mxu0 0.0
        %776 = vmatprep.subr.mxu0 0.0
        %777 = vmatpush1.msra.mxu0 0.0
        %778 = vmatprep.subr.mxu0 0.0
        %779 = vmatpush1.msra.mxu0 0.0
        %780 = vmatprep.subr.mxu0 0.0
        %781 = vmatpush1.msra.mxu0 0.0
        %782 = vmatprep.subr.mxu0 0.0
        %783 = vmatpush1.msra.mxu0 0.0
        %784 = vmatprep.subr.mxu0 0.0
        %785 = vmatpush1.msra.mxu0 0.0
        %786 = vmatprep.subr.mxu0 0.0
        %787 = vmatpush1.msra.mxu0 0.0
        %788 = vmatprep.subr.mxu0 0.0
        %789 = vmatpush1.msra.mxu0 0.0
        %790 = vmatprep.subr.mxu0 0.0
        %791 = vmatpush1.msra.mxu0 0.0
        %792 = vmatprep.subr.mxu0 0.0
        %793 = vmatpush1.msra.mxu0 0.0
        %794 = vmatprep.subr.mxu0 0.0
        %795 = vmatpush1.msra.mxu0 0.0
        %796 = vmatprep.subr.mxu0 0.0
        %797 = vmatpush1.msra.mxu0 0.0
        %798 = vmatprep.subr.mxu0 0.0
        %799 = vmatpush1.msra.mxu0 0.0
        %800 = vmatprep.subr.mxu0 0.0
        %801 = vmatpush1.msra.mxu0 0.0
        %802 = vmatprep.subr.mxu0 0.0
        %803 = vmatpush1.msra.mxu0 0.0
        %804 = vmatprep.mubr.f32.mxu0 0.0
        %v805 = vand.u32 %v504, 4294901760
        %v806 = vsub.f32 %v504, %v805
        %807 = vmatmul.mubr.f32.gmra.mrb[0].mxu0 %v806
        %v808 = vpop.f32.mrb[0].mxu0
        %v809 = vadd.f32 %v711, %v808
        %v810 = vpop.f32.mrb[0].mxu0
        %v811 = vadd.f32 %v713, %v810
        %812 = vmatprep.mubr.f32.mxu0 0.0
        %v813 = vand.u32 %v507, 4294901760
        %v814 = vsub.f32 %v507, %v813
        %815 = vmatmul.mubr.f32.gmra.mrb[0].mxu0 %v814
        %v816 = vpop.f32.mrb[0].mxu0
        %v817 = vadd.f32 %v718, %v816
        %v818 = vpop.f32.mrb[0].mxu0
        %v819 = vadd.f32 %v720, %v818
        %820 = vmatprep.mubr.f32.mxu0 0.0
        %v821 = vand.u32 %v510, 4294901760
        %v822 = vsub.f32 %v510, %v821
        %823 = vmatmul.mubr.f32.gmra.mrb[0].mxu0 %v822
        %v824 = vpop.f32.mrb[0].mxu0
        %v825 = vadd.f32 %v725, %v824
        %v826 = vpop.f32.mrb[0].mxu0
        %v827 = vadd.f32 %v727, %v826
        %828 = vmatprep.mubr.f32.mxu0 0.0
        %v829 = vand.u32 %v513, 4294901760
        %v830 = vsub.f32 %v513, %v829
        %831 = vmatmul.mubr.f32.gmra.mrb[0].mxu0 %v830
        %v832 = vpop.f32.mrb[0].mxu0
        %v833 = vadd.f32 %v732, %v832
        %v834 = vpop.f32.mrb[0].mxu0
        %v835 = vadd.f32 %v734, %v834
        %836 = vdwg.mxu0
        %v837 = vand.u32 %v520, 4294901760
        %838 = vmatprep.subr.mxu0 %v837
        %v839 = vand.u32 %v517, 4294901760
        %840 = vmatpush1.msra.mxu0 %v839
        %841 = vmatprep.subr.mxu0 0.0
        %842 = vmatpush1.msra.mxu0 0.0
        %843 = vmatprep.subr.mxu0 0.0
        %844 = vmatpush1.msra.mxu0 0.0
        %845 = vmatprep.subr.mxu0 0.0
        %846 = vmatpush1.msra.mxu0 0.0
        %847 = vmatprep.subr.mxu0 0.0
        %848 = vmatpush1.msra.mxu0 0.0
        %849 = vmatprep.subr.mxu0 0.0
        %850 = vmatpush1.msra.mxu0 0.0
        %851 = vmatprep.subr.mxu0 0.0
        %852 = vmatpush1.msra.mxu0 0.0
        %853 = vmatprep.subr.mxu0 0.0
        %854 = vmatpush1.msra.mxu0 0.0
        %855 = vmatprep.subr.mxu0 0.0
        %856 = vmatpush1.msra.mxu0 0.0
        %857 = vmatprep.subr.mxu0 0.0
        %858 = vmatpush1.msra.mxu0 0.0
        %859 = vmatprep.subr.mxu0 0.0
        %860 = vmatpush1.msra.mxu0 0.0
        %861 = vmatprep.subr.mxu0 0.0
        %862 = vmatpush1.msra.mxu0 0.0
        %863 = vmatprep.subr.mxu0 0.0
        %864 = vmatpush1.msra.mxu0 0.0
        %865 = vmatprep.subr.mxu0 0.0
        %866 = vmatpush1.msra.mxu0 0.0
        %867 = vmatprep.subr.mxu0 0.0
        %868 = vmatpush1.msra.mxu0 0.0
        %869 = vmatprep.subr.mxu0 0.0
        %870 = vmatpush1.msra.mxu0 0.0
        %871 = vmatprep.subr.mxu0 0.0
        %872 = vmatpush1.msra.mxu0 0.0
        %873 = vmatprep.subr.mxu0 0.0
        %874 = vmatpush1.msra.mxu0 0.0
        %875 = vmatprep.subr.mxu0 0.0
        %876 = vmatpush1.msra.mxu0 0.0
        %877 = vmatprep.subr.mxu0 0.0
        %878 = vmatpush1.msra.mxu0 0.0
        %879 = vmatprep.subr.mxu0 0.0
        %880 = vmatpush1.msra.mxu0 0.0
        %881 = vmatprep.subr.mxu0 0.0
        %882 = vmatpush1.msra.mxu0 0.0
        %883 = vmatprep.subr.mxu0 0.0
        %884 = vmatpush1.msra.mxu0 0.0
        %885 = vmatprep.subr.mxu0 0.0
        %886 = vmatpush1.msra.mxu0 0.0
        %887 = vmatprep.subr.mxu0 0.0
        %888 = vmatpush1.msra.mxu0 0.0
        %889 = vmatprep.subr.mxu0 0.0
        %890 = vmatpush1.msra.mxu0 0.0
        %891 = vmatprep.subr.mxu0 0.0
        %892 = vmatpush1.msra.mxu0 0.0
        %893 = vmatprep.subr.mxu0 0.0
        %894 = vmatpush1.msra.mxu0 0.0
        %895 = vmatprep.subr.mxu0 0.0
        %896 = vmatpush1.msra.mxu0 0.0
        %897 = vmatprep.subr.mxu0 0.0
        %898 = vmatpush1.msra.mxu0 0.0
        %899 = vmatprep.subr.mxu0 0.0
        %900 = vmatpush1.msra.mxu0 0.0
        %901 = vmatprep.subr.mxu0 0.0
        %902 = vmatpush1.msra.mxu0 0.0
        %903 = vmatprep.mubr.f32.mxu0 0.0
        %v904 = vand.u32 %v504, 4294901760
        %v905 = vsub.f32 %v504, %v904
        %v906 = vand.u32 %v905, 4294901760
        %907 = vmatmul.mubr.f32.gmra.mrb[0].mxu0 %v906
        %v908 = vpop.f32.mrb[0].mxu0
        %v909 = vadd.f32 %v809, %v908
        %v910 = vpop.f32.mrb[0].mxu0
        %v911 = vadd.f32 %v811, %v910
        %912 = vmatprep.mubr.f32.mxu0 0.0
        %v913 = vand.u32 %v507, 4294901760
        %v914 = vsub.f32 %v507, %v913
        %v915 = vand.u32 %v914, 4294901760
        %916 = vmatmul.mubr.f32.gmra.mrb[0].mxu0 %v915
        %v917 = vpop.f32.mrb[0].mxu0
        %v918 = vadd.f32 %v817, %v917
        %v919 = vpop.f32.mrb[0].mxu0
        %v920 = vadd.f32 %v819, %v919
        %921 = vmatprep.mubr.f32.mxu0 0.0
        %v922 = vand.u32 %v510, 4294901760
        %v923 = vsub.f32 %v510, %v922
        %v924 = vand.u32 %v923, 4294901760
        %925 = vmatmul.mubr.f32.gmra.mrb[0].mxu0 %v924
        %v926 = vpop.f32.mrb[0].mxu0
        %v927 = vadd.f32 %v825, %v926
        %v928 = vpop.f32.mrb[0].mxu0
        %v929 = vadd.f32 %v827, %v928
        %930 = vmatprep.mubr.f32.mxu0 0.0
        %v931 = vand.u32 %v513, 4294901760
        %v932 = vsub.f32 %v513, %v931
        %v933 = vand.u32 %v932, 4294901760
        %934 = vmatmul.mubr.f32.gmra.mrb[0].mxu0 %v933
        %v935 = vpop.f32.mrb[0].mxu0
        %v936 = vadd.f32 %v833, %v935
        %v937 = vpop.f32.mrb[0].mxu0
        %v938 = vadd.f32 %v835, %v937
        %939 = vdwg.mxu0
        %v940 = vand.u32 %v520, 4294901760
        %v941 = vsub.f32 %v520, %v940
        %v942 = vand.u32 %v941, 4294901760
        %943 = vmatprep.subr.mxu0 %v942
        %v944 = vand.u32 %v517, 4294901760
        %v945 = vsub.f32 %v517, %v944
        %v946 = vand.u32 %v945, 4294901760
        %947 = vmatpush1.msra.mxu0 %v946
        %948 = vmatprep.subr.mxu0 0.0
        %949 = vmatpush1.msra.mxu0 0.0
        %950 = vmatprep.subr.mxu0 0.0
        %951 = vmatpush1.msra.mxu0 0.0
        %952 = vmatprep.subr.mxu0 0.0
        %953 = vmatpush1.msra.mxu0 0.0
        %954 = vmatprep.subr.mxu0 0.0
        %955 = vmatpush1.msra.mxu0 0.0
        %956 = vmatprep.subr.mxu0 0.0
        %957 = vmatpush1.msra.mxu0 0.0
        %958 = vmatprep.subr.mxu0 0.0
        %959 = vmatpush1.msra.mxu0 0.0
        %960 = vmatprep.subr.mxu0 0.0
        %961 = vmatpush1.msra.mxu0 0.0
        %962 = vmatprep.subr.mxu0 0.0
        %963 = vmatpush1.msra.mxu0 0.0
        %964 = vmatprep.subr.mxu0 0.0
        %965 = vmatpush1.msra.mxu0 0.0
        %966 = vmatprep.subr.mxu0 0.0
        %967 = vmatpush1.msra.mxu0 0.0
        %968 = vmatprep.subr.mxu0 0.0
        %969 = vmatpush1.msra.mxu0 0.0
        %970 = vmatprep.subr.mxu0 0.0
        %971 = vmatpush1.msra.mxu0 0.0
        %972 = vmatprep.subr.mxu0 0.0
        %973 = vmatpush1.msra.mxu0 0.0
        %974 = vmatprep.subr.mxu0 0.0
        %975 = vmatpush1.msra.mxu0 0.0
        %976 = vmatprep.subr.mxu0 0.0
        %977 = vmatpush1.msra.mxu0 0.0
        %978 = vmatprep.subr.mxu0 0.0
        %979 = vmatpush1.msra.mxu0 0.0
        %980 = vmatprep.subr.mxu0 0.0
        %981 = vmatpush1.msra.mxu0 0.0
        %982 = vmatprep.subr.mxu0 0.0
        %983 = vmatpush1.msra.mxu0 0.0
        %984 = vmatprep.subr.mxu0 0.0
        %985 = vmatpush1.msra.mxu0 0.0
        %986 = vmatprep.subr.mxu0 0.0
        %987 = vmatpush1.msra.mxu0 0.0
        %988 = vmatprep.subr.mxu0 0.0
        %989 = vmatpush1.msra.mxu0 0.0
        %990 = vmatprep.subr.mxu0 0.0
        %991 = vmatpush1.msra.mxu0 0.0
        %992 = vmatprep.subr.mxu0 0.0
        %993 = vmatpush1.msra.mxu0 0.0
        %994 = vmatprep.subr.mxu0 0.0
        %995 = vmatpush1.msra.mxu0 0.0
        %996 = vmatprep.subr.mxu0 0.0
        %997 = vmatpush1.msra.mxu0 0.0
        %998 = vmatprep.subr.mxu0 0.0
        %999 = vmatpush1.msra.mxu0 0.0
        %1000 = vmatprep.subr.mxu0 0.0
        %1001 = vmatpush1.msra.mxu0 0.0
        %1002 = vmatprep.subr.mxu0 0.0
        %1003 = vmatpush1.msra.mxu0 0.0
        %1004 = vmatprep.subr.mxu0 0.0
        %1005 = vmatpush1.msra.mxu0 0.0
        %1006 = vmatprep.subr.mxu0 0.0
        %1007 = vmatpush1.msra.mxu0 0.0
        %1008 = vmatprep.subr.mxu0 0.0
        %1009 = vmatpush1.msra.mxu0 0.0
        %1010 = vmatprep.mubr.f32.mxu0 0.0
        %v1011 = vand.u32 %v504, 4294901760
        %1012 = vmatmul.mubr.f32.gmra.mrb[0].mxu0 %v1011
        %v1013 = vpop.f32.mrb[0].mxu0
        %v1014 = vadd.f32 %v909, %v1013
        %v1015 = vpop.f32.mrb[0].mxu0
        %v1016 = vadd.f32 %v911, %v1015
        %1017 = vmatprep.mubr.f32.mxu0 0.0
        %v1018 = vand.u32 %v507, 4294901760
        %1019 = vmatmul.mubr.f32.gmra.mrb[0].mxu0 %v1018
        %v1020 = vpop.f32.mrb[0].mxu0
        %v1021 = vadd.f32 %v918, %v1020
        %v1022 = vpop.f32.mrb[0].mxu0
        %v1023 = vadd.f32 %v920, %v1022
        %1024 = vmatprep.mubr.f32.mxu0 0.0
        %v1025 = vand.u32 %v510, 4294901760
        %1026 = vmatmul.mubr.f32.gmra.mrb[0].mxu0 %v1025
        %v1027 = vpop.f32.mrb[0].mxu0
        %v1028 = vadd.f32 %v927, %v1027
        %v1029 = vpop.f32.mrb[0].mxu0
        %v1030 = vadd.f32 %v929, %v1029
        %1031 = vmatprep.mubr.f32.mxu0 0.0
        %v1032 = vand.u32 %v513, 4294901760
        %1033 = vmatmul.mubr.f32.gmra.mrb[0].mxu0 %v1032
        %v1034 = vpop.f32.mrb[0].mxu0
        %v1035 = vadd.f32 %v936, %v1034
        %v1036 = vpop.f32.mrb[0].mxu0
        %v1037 = vadd.f32 %v938, %v1036
        %1038 = vdwg.mxu0
        %v1039 = vand.u32 %v520, 4294901760
        %1040 = vmatprep.subr.mxu0 %v1039
        %v1041 = vand.u32 %v517, 4294901760
        %1042 = vmatpush1.msra.mxu0 %v1041
        %1043 = vmatprep.subr.mxu0 0.0
        %1044 = vmatpush1.msra.mxu0 0.0
        %1045 = vmatprep.subr.mxu0 0.0
        %1046 = vmatpush1.msra.mxu0 0.0
        %1047 = vmatprep.subr.mxu0 0.0
        %1048 = vmatpush1.msra.mxu0 0.0
        %1049 = vmatprep.subr.mxu0 0.0
        %1050 = vmatpush1.msra.mxu0 0.0
        %1051 = vmatprep.subr.mxu0 0.0
        %1052 = vmatpush1.msra.mxu0 0.0
        %1053 = vmatprep.subr.mxu0 0.0
        %1054 = vmatpush1.msra.mxu0 0.0
        %1055 = vmatprep.subr.mxu0 0.0
        %1056 = vmatpush1.msra.mxu0 0.0
        %1057 = vmatprep.subr.mxu0 0.0
        %1058 = vmatpush1.msra.mxu0 0.0
        %1059 = vmatprep.subr.mxu0 0.0
        %1060 = vmatpush1.msra.mxu0 0.0
        %1061 = vmatprep.subr.mxu0 0.0
        %1062 = vmatpush1.msra.mxu0 0.0
        %1063 = vmatprep.subr.mxu0 0.0
        %1064 = vmatpush1.msra.mxu0 0.0
        %1065 = vmatprep.subr.mxu0 0.0
        %1066 = vmatpush1.msra.mxu0 0.0
        %1067 = vmatprep.subr.mxu0 0.0
        %1068 = vmatpush1.msra.mxu0 0.0
        %1069 = vmatprep.subr.mxu0 0.0
        %1070 = vmatpush1.msra.mxu0 0.0
        %1071 = vmatprep.subr.mxu0 0.0
        %1072 = vmatpush1.msra.mxu0 0.0
        %1073 = vmatprep.subr.mxu0 0.0
        %1074 = vmatpush1.msra.mxu0 0.0
        %1075 = vmatprep.subr.mxu0 0.0
        %1076 = vmatpush1.msra.mxu0 0.0
        %1077 = vmatprep.subr.mxu0 0.0
        %1078 = vmatpush1.msra.mxu0 0.0
        %1079 = vmatprep.subr.mxu0 0.0
        %1080 = vmatpush1.msra.mxu0 0.0
        %1081 = vmatprep.subr.mxu0 0.0
        %1082 = vmatpush1.msra.mxu0 0.0
        %1083 = vmatprep.subr.mxu0 0.0
        %1084 = vmatpush1.msra.mxu0 0.0
        %1085 = vmatprep.subr.mxu0 0.0
        %1086 = vmatpush1.msra.mxu0 0.0
        %1087 = vmatprep.subr.mxu0 0.0
        %1088 = vmatpush1.msra.mxu0 0.0
        %1089 = vmatprep.subr.mxu0 0.0
        %1090 = vmatpush1.msra.mxu0 0.0
        %1091 = vmatprep.subr.mxu0 0.0
        %1092 = vmatpush1.msra.mxu0 0.0
        %1093 = vmatprep.subr.mxu0 0.0
        %1094 = vmatpush1.msra.mxu0 0.0
        %1095 = vmatprep.subr.mxu0 0.0
        %1096 = vmatpush1.msra.mxu0 0.0
        %1097 = vmatprep.subr.mxu0 0.0
        %1098 = vmatpush1.msra.mxu0 0.0
        %1099 = vmatprep.subr.mxu0 0.0
        %1100 = vmatpush1.msra.mxu0 0.0
        %1101 = vmatprep.subr.mxu0 0.0
        %1102 = vmatpush1.msra.mxu0 0.0
        %1103 = vmatprep.subr.mxu0 0.0
        %1104 = vmatpush1.msra.mxu0 0.0
        %1105 = vmatprep.mubr.f32.mxu0 0.0
        %v1106 = vand.u32 %v504, 4294901760
        %1107 = vmatmul.mubr.f32.gmra.mrb[0].mxu0 %v1106
        %v1108 = vpop.f32.mrb[0].mxu0
        %v1109 = vadd.f32 %v1014, %v1108
        %v1110 = vpop.f32.mrb[0].mxu0
        %v1111 = vadd.f32 %v1016, %v1110
        %1112 = vmatprep.mubr.f32.mxu0 0.0
        %v1113 = vand.u32 %v507, 4294901760
        %1114 = vmatmul.mubr.f32.gmra.mrb[0].mxu0 %v1113
        %v1115 = vpop.f32.mrb[0].mxu0
        %v1116 = vadd.f32 %v1021, %v1115
        %v1117 = vpop.f32.mrb[0].mxu0
        %v1118 = vadd.f32 %v1023, %v1117
        %1119 = vmatprep.mubr.f32.mxu0 0.0
        %v1120 = vand.u32 %v510, 4294901760
        %1121 = vmatmul.mubr.f32.gmra.mrb[0].mxu0 %v1120
        %v1122 = vpop.f32.mrb[0].mxu0
        %v1123 = vadd.f32 %v1028, %v1122
        %v1124 = vpop.f32.mrb[0].mxu0
        %v1125 = vadd.f32 %v1030, %v1124
        %1126 = vmatprep.mubr.f32.mxu0 0.0
        %v1127 = vand.u32 %v513, 4294901760
        %1128 = vmatmul.mubr.f32.gmra.mrb[0].mxu0 %v1127
        %v1129 = vpop.f32.mrb[0].mxu0
        %v1130 = vadd.f32 %v1035, %v1129
        %v1131 = vpop.f32.mrb[0].mxu0
        %v1132 = vadd.f32 %v1037, %v1131
        %1133 = vdwg.mxu0
        %v1134 = vadd.f32 %v1109, 3.0
        %v1135 = vadd.f32 %v1111, 3.0
        %v1136 = vadd.f32 %v1116, 3.0
        %v1137 = vadd.f32 %v1118, 3.0
        %v1138 = vadd.f32 %v1123, 3.0
        %v1139 = vadd.f32 %v1125, 3.0
        %v1140 = vadd.f32 %v1130, 3.0
        %v1141 = vadd.f32 %v1132, 3.0
        %v1142 = vmax.f32 %v1134, 0.0
        %v1143 = vmax.f32 %v1135, 0.0
        %v1144 = vmax.f32 %v1136, 0.0
        %v1145 = vmax.f32 %v1137, 0.0
        %v1146 = vmax.f32 %v1138, 0.0
        %v1147 = vmax.f32 %v1139, 0.0
        %v1148 = vmax.f32 %v1140, 0.0
        %v1149 = vmax.f32 %v1141, 0.0
        %v1150 = vmin.f32 %v1142, 6.0
        %v1151 = vmin.f32 %v1143, 6.0
        %v1152 = vmin.f32 %v1144, 6.0
        %v1153 = vmin.f32 %v1145, 6.0
        %v1154 = vmin.f32 %v1146, 6.0
        %v1155 = vmin.f32 %v1147, 6.0
        %v1156 = vmin.f32 %v1148, 6.0
        %v1157 = vmin.f32 %v1149, 6.0
        %v1158 = vmul.f32 %v1109, %v1150
        %v1159 = vmul.f32 %v1111, %v1151
        %v1160 = vmul.f32 %v1116, %v1152
        %v1161 = vmul.f32 %v1118, %v1153
        %v1162 = vmul.f32 %v1123, %v1154
        %v1163 = vmul.f32 %v1125, %v1155
        %v1164 = vmul.f32 %v1130, %v1156
        %v1165 = vmul.f32 %v1132, %v1157
        %v1166 = vmul.f32 %v1158, 0.16666667
        %v1167 = vmul.f32 %v1159, 0.16666667
        %v1168 = vmul.f32 %v1160, 0.16666667
        %v1169 = vmul.f32 %v1161, 0.16666667
        %v1170 = vmul.f32 %v1162, 0.16666667
        %v1171 = vmul.f32 %v1163, 0.16666667
        %v1172 = vmul.f32 %v1164, 0.16666667
        %v1173 = vmul.f32 %v1165, 0.16666667
        %1174 = vst [vmem:[%s217] sm:$0xff] %v1166
        %1175 = vst [vmem:[%s217 + $0x8] sm:$0xff] %v1167
        %1176 = vst [vmem:[%s217 + $0x10] sm:$0xff] %v1168
        %1177 = vst [vmem:[%s217 + $0x18] sm:$0xff] %v1169
        %1178 = vst [vmem:[%s217 + $0x20] sm:$0xff] %v1170
        %1179 = vst [vmem:[%s217 + $0x28] sm:$0xff] %v1171
        %1180 = vst [vmem:[%s217 + $0x30] sm:$0xff] %v1172
        %1181 = vst [vmem:[%s217 + $0x38] sm:$0xff] %v1173
        %s1182 = sand.u32 %s137, 1
        %s1183 = scalar_lea.sflag [#allocation3], %s1182
        %s1184 = sand.u32 %s137, 1
        %s1185 = smul.addr %s1184, 64
        %s1186 = scalar_lea.vmem [#allocation2], %s1185
        // Predicated region
        $region41: #{tpu_custom_call.1} parent=39 // pred_check
          %p1187 = pneg %p147
        $region42: #{tpu_custom_call.1} parent=39 // pred_check_branch
          %1189 = sbr.rel (%p1187) target = $region44
        $region43: #{tpu_custom_call.1} parent=39 // pred_region
          %s1191 = ssub.s32 1024, 1024
          %1192 = vsyncadd %s1183, %s1191
          %s1193 = smul.addr %s19, 8
          %s1194 = smul.addr %s1193, 128
          %s1195 = scalar_lea.hbm %s5, %s1194
          %s1196 = sshll.u32 %s1186, 4
          %s1197 = int_to_ptr.vmem [resolvable:$true] %s1196
          %1202 = dma.vmem_to_hbm [thread:$0]  %s1197, 1024, %s1195, %s1183, 256, 256, 16
        $region44: #{tpu_custom_call.1} parent=39 // pred_fallthru
          _
      $region40: #{tpu_custom_call.1} parent=5 // pred_fallthru
        _
      %p1203 = scmp.le.s32.totalorder 2, %s14
      // Predicated region
      $region45: #{tpu_custom_call.1} parent=5 // pred_check
        %p1204 = pneg %p1203
      $region46: #{tpu_custom_call.1} parent=5 // pred_check_branch
        %1206 = sbr.rel (%p1204) target = $region48
      $region47: #{tpu_custom_call.1} parent=5 // pred_region
        %s1207 = ssub.s32 %s14, 2
        // Predicated region
        $region49: #{tpu_custom_call.1} parent=47 // pred_check
          %p1208 = pneg %p153
        $region50: #{tpu_custom_call.1} parent=47 // pred_check_branch
          %1210 = sbr.rel (%p1208) target = $region52
        $region51: #{tpu_custom_call.1} parent=47 // pred_region
          %s1211 = sand.u32 %s138, 1
          %s1212 = scalar_lea.sflag [#allocation3], %s1211
          %s1213 = sand.u32 %s138, 1
          %s1214 = smul.addr %s1213, 64
          %s1215 = scalar_lea.vmem [#allocation2], %s1214
          %1216 = dma.done %s1212, 1024
        $region52: #{tpu_custom_call.1} parent=47 // pred_fallthru
          _
      $region48: #{tpu_custom_call.1} parent=5 // pred_fallthru
        _
    $region6: #{tpu_custom_call.1} parent=1 // loop_footer
      %s18 = sadd.s32 1, %s14
    $region7: #{tpu_custom_call.1} parent=1 // loop_footer_branch
      %13 = sbr.rel target = $region3
    $region8: #{tpu_custom_call.1} parent=1 // loop_exit
      _
    %1217 = vsyncpa [#allocation3], 1
    %s1218 = scalar_lea.sflag [#allocation3], 1
    %1219 = vsyncpa %s1218, 1

</llo_original>
